<compile_context>
chip_gen: v5e
topology: v5e:2x2
jax: 0.10.0
libtpu: 0.0.40
codegen_flags: <defaults>
</compile_context>

<pallas_src>
import numpy as np

import jax
import jax.numpy as jnp
from jax.experimental import pallas as pl
from jax.experimental.pallas import tpu as pltpu


_COMPUTE_DTYPE = jnp.bfloat16   # MXU operand dtype (accumulate + epilogue in f32)

# Feature widths along the layer chain, zero-padded to sublane multiples of 8:
#   75 (=3*5*5 in) -> conv1 125->128 -> conv2 125->128 -> conv3 180->184
#   -> fc1 90->96 -> fc2 45->48 -> fc3 1
_FEATS = (75, 128, 128, 184, 96, 48, 1)


def _round_up(x, m):
    return (x + m - 1) // m * m


def _pad2d(a, rows, cols):
    return np.pad(a, ((0, rows - a.shape[0]), (0, cols - a.shape[1])))


def _conv_as_matrix(w, b, in_hw, pad):
    """Fold a (tiny) PyTorch Conv2d into a dense matrix on NCHW-flattened features.

    Returns (Wm, bvec) with Wm: (O*Ho*Wo, C*H*W), bvec: (O*Ho*Wo, 1) such that
    Wm @ flat_in + bvec == F.conv2d(x, w, b, padding=pad) flattened NCHW-style.
    """
    w = np.asarray(w, np.float32)
    b = np.asarray(b, np.float32)
    o_ch, c_ch, kh, kw = w.shape
    h_in, w_in = in_hw
    h_out = h_in + 2 * pad - kh + 1
    w_out = w_in + 2 * pad - kw + 1
    mat = np.zeros((o_ch * h_out * w_out, c_ch * h_in * w_in), np.float32)
    for o in range(o_ch):
        for oh in range(h_out):
            for ow in range(w_out):
                row = (o * h_out + oh) * w_out + ow
                for i in range(kh):
                    ih = oh + i - pad
                    if ih < 0 or ih >= h_in:
                        continue
                    for j in range(kw):
                        iw = ow + j - pad
                        if iw < 0 or iw >= w_in:
                            continue
                        for c in range(c_ch):
                            mat[row, (c * h_in + ih) * w_in + iw] = w[o, c, i, j]
    bvec = np.repeat(b, h_out * w_out).reshape(-1, 1).astype(np.float32)
    return mat, bvec


# ----------------------------------------------------------------------------
# Parameters
# ----------------------------------------------------------------------------
def init_raw_params(key):
    """PyTorch-layout NNGrid params (Conv2d: (O, C, kh, kw); Linear: (out, in))."""
    keys = jax.random.split(key, 12)

    def u(k, shape, fan_in):
        bound = 1.0 / jnp.sqrt(fan_in)
        return jax.random.uniform(k, shape, jnp.float32, -bound, bound)

    return {
        "conv1_w": u(keys[0], (5, 3, 3, 3), 3 * 3 * 3),
        "conv1_b": u(keys[1], (5,), 3 * 3 * 3),
        "conv2_w": u(keys[2], (5, 5, 3, 3), 5 * 3 * 3),
        "conv2_b": u(keys[3], (5,), 5 * 3 * 3),
        "conv3_w": u(keys[4], (5, 5, 2, 2), 5 * 2 * 2),
        "conv3_b": u(keys[5], (5,), 5 * 2 * 2),
        "fc1_w": u(keys[6], (90, 180), 180),
        "fc1_b": u(keys[7], (90,), 180),
        "fc2_w": u(keys[8], (45, 90), 90),
        "fc2_b": u(keys[9], (45,), 90),
        "fc3_w": u(keys[10], (1, 45), 45),
        "fc3_b": u(keys[11], (1,), 45),
    }


def prepare_params(raw):
    """Kernel-ready params: convs folded to dense matrices, all layers stored as
    (F_out, F_in) with zero padding to _FEATS, biases as (F_out, 1) f32."""
    w1, b1 = _conv_as_matrix(raw["conv1_w"], raw["conv1_b"], (5, 5), pad=1)   # (125, 75)
    w2, b2 = _conv_as_matrix(raw["conv2_w"], raw["conv2_b"], (5, 5), pad=1)   # (125, 125)
    w3, b3 = _conv_as_matrix(raw["conv3_w"], raw["conv3_b"], (5, 5), pad=1)   # (180, 125)
    w4 = np.asarray(raw["fc1_w"], np.float32)
    b4 = np.asarray(raw["fc1_b"], np.float32)[:, None]
    w5 = np.asarray(raw["fc2_w"], np.float32)
    b5 = np.asarray(raw["fc2_b"], np.float32)[:, None]
    w6 = np.asarray(raw["fc3_w"], np.float32)
    b6 = np.asarray(raw["fc3_b"], np.float32)[:, None]

    params = {}
    layers = ((w1, b1), (w2, b2), (w3, b3), (w4, b4), (w5, b5), (w6, b6))
    for l, (w, b) in enumerate(layers, start=1):
        f_in, f_out = _FEATS[l - 1], _FEATS[l]
        params[f"w{l}"] = jnp.asarray(_pad2d(w, f_out, f_in), _COMPUTE_DTYPE)
        params[f"b{l}"] = jnp.asarray(_pad2d(b, f_out, 1), jnp.float32)
    return params


# ----------------------------------------------------------------------------
# Fused Pallas kernel: whole forward for one batch tile (batch on the lane axis)
# ----------------------------------------------------------------------------
def _nngrid_fused_kernel(x_ref,
                         w1_ref, b1_ref, w2_ref, b2_ref, w3_ref, b3_ref,
                         w4_ref, b4_ref, w5_ref, b5_ref, w6_ref, b6_ref,
                         o_ref):
    compute_dtype = x_ref.dtype

    def dense(h, w_ref, b_ref, act):
        # (F_out, F_in) @ (F_in, BT) on the MXU, f32 accumulate + f32 epilogue.
        y = jnp.dot(w_ref[...], h, preferred_element_type=jnp.float32)
        y = y + b_ref[...]                       # (F_out, 1) broadcast over lanes
        if act == "relu":
            return jnp.maximum(y, 0.0).astype(compute_dtype)
        return jnp.tanh(y)                       # final layer stays f32

    h = x_ref[...]                               # (75,  BT)
    h = dense(h, w1_ref, b1_ref, "relu")         # conv1 (as dense)     (128, BT)
    h = dense(h, w2_ref, b2_ref, "relu")         # conv2                (128, BT)
    h = dense(h, w3_ref, b3_ref, "relu")         # conv3                (184, BT)
    h = dense(h, w4_ref, b4_ref, "relu")         # fc1 (+drop1 = id)    (96,  BT)
    h = dense(h, w5_ref, b5_ref, "relu")         # fc2 (+drop2 = id)    (48,  BT)
    y = dense(h, w6_ref, b6_ref, "tanh")         # fc3                  (1,   BT)
    o_ref[...] = y.astype(o_ref.dtype)           # lane-dense store


def nngrid_forward(params, x, *, block_b=256):
    """x: (N, 3, 5, 5) NCHW -> (N, 1); matches NNGrid.forward (eval mode)."""
    n = x.shape[0]
    assert tuple(x.shape[1:]) == (3, 5, 5), x.shape
    f_in = _FEATS[0]

    bt = min(block_b, _round_up(n, 128))         # batch tile (multiple of 128 lanes)
    n_pad = _round_up(n, bt)
    grid = (n_pad // bt,)

    # NCHW flatten (matches torch .view), zero-pad batch, batch -> lane axis.
    xt = jnp.pad(x.reshape(n, f_in).astype(_COMPUTE_DTYPE), ((0, n_pad - n), (0, 0))).T

    operands = [xt]
    in_specs = [pl.BlockSpec((f_in, bt), lambda i: (0, i))]
    for l in range(1, 7):
        w, b = params[f"w{l}"], params[f"b{l}"]
        operands += [w, b]
        # Full-array blocks, constant index_map -> fetched once, VMEM-resident.
        in_specs += [pl.BlockSpec(w.shape, lambda i: (0, 0)),
                     pl.BlockSpec(b.shape, lambda i: (0, 0))]

    out = pl.pallas_call(
        _nngrid_fused_kernel,
        out_shape=jax.ShapeDtypeStruct((1, n_pad), jnp.float32),
        grid=grid,
        in_specs=in_specs,
        out_specs=pl.BlockSpec((1, bt), lambda i: (0, i)),
        compiler_params=pltpu.CompilerParams(
            dimension_semantics=("parallel",),
            vmem_limit_bytes=32 * 1024 * 1024,
        ),
    )(*operands)
    return out[0, :n].reshape(n, 1)


# ----------------------------------------------------------------------------
# Plain-JAX f32 reference of the original PyTorch graph (for a sanity check)
# ----------------------------------------------------------------------------
def _reference_forward(raw, x):
    def conv(h, w, b, pad):
        y = jax.lax.conv_general_dilated(
            h, w, window_strides=(1, 1), padding=[(pad, pad), (pad, pad)],
            dimension_numbers=("NCHW", "OIHW", "NCHW"))
        return y + b.reshape(1, -1, 1, 1)

    h = jax.nn.relu(conv(x, raw["conv1_w"], raw["conv1_b"], 1))
    h = jax.nn.relu(conv(h, raw["conv2_w"], raw["conv2_b"], 1))
    h = jax.nn.relu(conv(h, raw["conv3_w"], raw["conv3_b"], 1))
    h = h.reshape(-1, 180)
    h = jax.nn.relu(h @ raw["fc1_w"].T + raw["fc1_b"])
    h = jax.nn.relu(h @ raw["fc2_w"].T + raw["fc2_b"])
    return jnp.tanh(h @ raw["fc3_w"].T + raw["fc3_b"])


if __name__ == "__main__":
    key = jax.random.PRNGKey(0)
    pkey, xkey = jax.random.split(key)
    raw = init_raw_params(pkey)
    params = prepare_params(raw)

    # Input implied by forward: view(-1, 180) after conv3 (k=2, pad=1) requires
    # (H+1)*(W+1)*5 == 180  =>  H = W = 5.
    x = jax.random.normal(xkey, (2, 3, 5, 5), dtype=jnp.float32)

    out = jax.jit(nngrid_forward)(params, x)
    out = jax.block_until_ready(out)
    assert out.shape == (2, 1), out.shape
    assert bool(jnp.all(jnp.isfinite(out)))

    # Loose sanity check vs. f32 reference (kernel uses bf16 MXU operands).
    ref = _reference_forward(raw, x)
    max_err = float(jnp.max(jnp.abs(out - ref)))
    assert max_err < 0.1, max_err

    print("KERNEL_OK")
</pallas_src>

<mosaic_0001>
module attributes {stable_mosaic.version = 11 : i64} {
  func.func @_nngrid_fused_kernel(%arg0: i32, %arg1: memref<75x128xbf16, #tpu.memory_space<vmem>>, %arg2: memref<128x75xbf16, #tpu.memory_space<vmem>>, %arg3: memref<128x1xf32, #tpu.memory_space<vmem>>, %arg4: memref<128x128xbf16, #tpu.memory_space<vmem>>, %arg5: memref<128x1xf32, #tpu.memory_space<vmem>>, %arg6: memref<184x128xbf16, #tpu.memory_space<vmem>>, %arg7: memref<184x1xf32, #tpu.memory_space<vmem>>, %arg8: memref<96x184xbf16, #tpu.memory_space<vmem>>, %arg9: memref<96x1xf32, #tpu.memory_space<vmem>>, %arg10: memref<48x96xbf16, #tpu.memory_space<vmem>>, %arg11: memref<48x1xf32, #tpu.memory_space<vmem>>, %arg12: memref<1x48xbf16, #tpu.memory_space<vmem>>, %arg13: memref<1x1xf32, #tpu.memory_space<vmem>>, %arg14: memref<1x128xf32, #tpu.memory_space<vmem>>) attributes {dimension_semantics = [#tpu.dimension_semantics<parallel>], iteration_bounds = array<i64: 1>, scalar_prefetch = 0 : i64, scratch_operands = 0 : i64, tpu.core_type = #tpu.core_type<tc>, window_params = [{transform_indices = @transform_0, window_bounds = array<i64: 75, 128>}, {pipeline_mode = #tpu.pipeline_mode<synchronous>, transform_indices = @transform_1, window_bounds = array<i64: 128, 75>}, {pipeline_mode = #tpu.pipeline_mode<synchronous>, transform_indices = @transform_2, window_bounds = array<i64: 128, 1>}, {pipeline_mode = #tpu.pipeline_mode<synchronous>, transform_indices = @transform_3, window_bounds = array<i64: 128, 128>}, {pipeline_mode = #tpu.pipeline_mode<synchronous>, transform_indices = @transform_4, window_bounds = array<i64: 128, 1>}, {pipeline_mode = #tpu.pipeline_mode<synchronous>, transform_indices = @transform_5, window_bounds = array<i64: 184, 128>}, {pipeline_mode = #tpu.pipeline_mode<synchronous>, transform_indices = @transform_6, window_bounds = array<i64: 184, 1>}, {pipeline_mode = #tpu.pipeline_mode<synchronous>, transform_indices = @transform_7, window_bounds = array<i64: 96, 184>}, {pipeline_mode = #tpu.pipeline_mode<synchronous>, transform_indices = @transform_8, window_bounds = array<i64: 96, 1>}, {pipeline_mode = #tpu.pipeline_mode<synchronous>, transform_indices = @transform_9, window_bounds = array<i64: 48, 96>}, {pipeline_mode = #tpu.pipeline_mode<synchronous>, transform_indices = @transform_10, window_bounds = array<i64: 48, 1>}, {pipeline_mode = #tpu.pipeline_mode<synchronous>, transform_indices = @transform_11, window_bounds = array<i64: 1, 48>}, {pipeline_mode = #tpu.pipeline_mode<synchronous>, transform_indices = @transform_12, window_bounds = array<i64: 1, 1>}, {transform_indices = @transform_13, window_bounds = array<i64: 1, 128>}]} {
    %c0 = arith.constant 0 : index
    %c0_0 = arith.constant 0 : index
    %0 = vector.load %arg1[%c0, %c0_0] : memref<75x128xbf16, #tpu.memory_space<vmem>>, vector<75x128xbf16>
    %c0_1 = arith.constant 0 : index
    %c0_2 = arith.constant 0 : index
    %1 = vector.load %arg2[%c0_1, %c0_2] : memref<128x75xbf16, #tpu.memory_space<vmem>>, vector<128x75xbf16>
    %cst = arith.constant dense<0.000000e+00> : vector<128x128xf32>
    %2 = tpu.matmul %1, %0, %cst {dimension_numbers = #tpu.dot_dimension_numbers<[1], [0], [0], [1], [0, 0, 1, 1], [], []>} : vector<128x75xbf16>, vector<75x128xbf16>, vector<128x128xf32> -> vector<128x128xf32>
    %c0_3 = arith.constant 0 : index
    %c0_4 = arith.constant 0 : index
    %3 = vector.load %arg3[%c0_3, %c0_4] : memref<128x1xf32, #tpu.memory_space<vmem>>, vector<128x1xf32>
    %4 = vector.broadcast %3 : vector<128x1xf32> to vector<128x128xf32>
    %5 = arith.addf %2, %4 : vector<128x128xf32>
    %cst_5 = arith.constant 0.000000e+00 : f32
    %6 = vector.broadcast %cst_5 : f32 to vector<128x128xf32>
    %7 = arith.maximumf %5, %6 : vector<128x128xf32>
    %8 = arith.truncf %7 : vector<128x128xf32> to vector<128x128xbf16>
    %c0_6 = arith.constant 0 : index
    %c0_7 = arith.constant 0 : index
    %9 = vector.load %arg4[%c0_6, %c0_7] : memref<128x128xbf16, #tpu.memory_space<vmem>>, vector<128x128xbf16>
    %cst_8 = arith.constant dense<0.000000e+00> : vector<128x128xf32>
    %10 = tpu.matmul %9, %8, %cst_8 {dimension_numbers = #tpu.dot_dimension_numbers<[1], [0], [0], [1], [0, 0, 1, 1], [], []>} : vector<128x128xbf16>, vector<128x128xbf16>, vector<128x128xf32> -> vector<128x128xf32>
    %c0_9 = arith.constant 0 : index
    %c0_10 = arith.constant 0 : index
    %11 = vector.load %arg5[%c0_9, %c0_10] : memref<128x1xf32, #tpu.memory_space<vmem>>, vector<128x1xf32>
    %12 = vector.broadcast %11 : vector<128x1xf32> to vector<128x128xf32>
    %13 = arith.addf %10, %12 : vector<128x128xf32>
    %cst_11 = arith.constant 0.000000e+00 : f32
    %14 = vector.broadcast %cst_11 : f32 to vector<128x128xf32>
    %15 = arith.maximumf %13, %14 : vector<128x128xf32>
    %16 = arith.truncf %15 : vector<128x128xf32> to vector<128x128xbf16>
    %c0_12 = arith.constant 0 : index
    %c0_13 = arith.constant 0 : index
    %17 = vector.load %arg6[%c0_12, %c0_13] : memref<184x128xbf16, #tpu.memory_space<vmem>>, vector<184x128xbf16>
    %cst_14 = arith.constant dense<0.000000e+00> : vector<184x128xf32>
    %18 = tpu.matmul %17, %16, %cst_14 {dimension_numbers = #tpu.dot_dimension_numbers<[1], [0], [0], [1], [0, 0, 1, 1], [], []>} : vector<184x128xbf16>, vector<128x128xbf16>, vector<184x128xf32> -> vector<184x128xf32>
    %c0_15 = arith.constant 0 : index
    %c0_16 = arith.constant 0 : index
    %19 = vector.load %arg7[%c0_15, %c0_16] : memref<184x1xf32, #tpu.memory_space<vmem>>, vector<184x1xf32>
    %20 = vector.broadcast %19 : vector<184x1xf32> to vector<184x128xf32>
    %21 = arith.addf %18, %20 : vector<184x128xf32>
    %cst_17 = arith.constant 0.000000e+00 : f32
    %22 = vector.broadcast %cst_17 : f32 to vector<184x128xf32>
    %23 = arith.maximumf %21, %22 : vector<184x128xf32>
    %24 = arith.truncf %23 : vector<184x128xf32> to vector<184x128xbf16>
    %c0_18 = arith.constant 0 : index
    %c0_19 = arith.constant 0 : index
    %25 = vector.load %arg8[%c0_18, %c0_19] : memref<96x184xbf16, #tpu.memory_space<vmem>>, vector<96x184xbf16>
    %cst_20 = arith.constant dense<0.000000e+00> : vector<96x128xf32>
    %26 = tpu.matmul %25, %24, %cst_20 {dimension_numbers = #tpu.dot_dimension_numbers<[1], [0], [0], [1], [0, 0, 1, 1], [], []>} : vector<96x184xbf16>, vector<184x128xbf16>, vector<96x128xf32> -> vector<96x128xf32>
    %c0_21 = arith.constant 0 : index
    %c0_22 = arith.constant 0 : index
    %27 = vector.load %arg9[%c0_21, %c0_22] : memref<96x1xf32, #tpu.memory_space<vmem>>, vector<96x1xf32>
    %28 = vector.broadcast %27 : vector<96x1xf32> to vector<96x128xf32>
    %29 = arith.addf %26, %28 : vector<96x128xf32>
    %cst_23 = arith.constant 0.000000e+00 : f32
    %30 = vector.broadcast %cst_23 : f32 to vector<96x128xf32>
    %31 = arith.maximumf %29, %30 : vector<96x128xf32>
    %32 = arith.truncf %31 : vector<96x128xf32> to vector<96x128xbf16>
    %c0_24 = arith.constant 0 : index
    %c0_25 = arith.constant 0 : index
    %33 = vector.load %arg10[%c0_24, %c0_25] : memref<48x96xbf16, #tpu.memory_space<vmem>>, vector<48x96xbf16>
    %cst_26 = arith.constant dense<0.000000e+00> : vector<48x128xf32>
    %34 = tpu.matmul %33, %32, %cst_26 {dimension_numbers = #tpu.dot_dimension_numbers<[1], [0], [0], [1], [0, 0, 1, 1], [], []>} : vector<48x96xbf16>, vector<96x128xbf16>, vector<48x128xf32> -> vector<48x128xf32>
    %c0_27 = arith.constant 0 : index
    %c0_28 = arith.constant 0 : index
    %35 = vector.load %arg11[%c0_27, %c0_28] : memref<48x1xf32, #tpu.memory_space<vmem>>, vector<48x1xf32>
    %36 = vector.broadcast %35 : vector<48x1xf32> to vector<48x128xf32>
    %37 = arith.addf %34, %36 : vector<48x128xf32>
    %cst_29 = arith.constant 0.000000e+00 : f32
    %38 = vector.broadcast %cst_29 : f32 to vector<48x128xf32>
    %39 = arith.maximumf %37, %38 : vector<48x128xf32>
    %40 = arith.truncf %39 : vector<48x128xf32> to vector<48x128xbf16>
    %c0_30 = arith.constant 0 : index
    %c0_31 = arith.constant 0 : index
    %41 = vector.load %arg12[%c0_30, %c0_31] : memref<1x48xbf16, #tpu.memory_space<vmem>>, vector<1x48xbf16>
    %cst_32 = arith.constant dense<0.000000e+00> : vector<1x128xf32>
    %42 = tpu.matmul %41, %40, %cst_32 {dimension_numbers = #tpu.dot_dimension_numbers<[1], [0], [0], [1], [0, 0, 1, 1], [], []>} : vector<1x48xbf16>, vector<48x128xbf16>, vector<1x128xf32> -> vector<1x128xf32>
    %c0_33 = arith.constant 0 : index
    %c0_34 = arith.constant 0 : index
    %43 = vector.load %arg13[%c0_33, %c0_34] : memref<1x1xf32, #tpu.memory_space<vmem>>, vector<1x1xf32>
    %44 = vector.broadcast %43 : vector<1x1xf32> to vector<1x128xf32>
    %45 = arith.addf %42, %44 : vector<1x128xf32>
    %46 = math.tanh %45 : vector<1x128xf32>
    %c0_35 = arith.constant 0 : index
    %c0_36 = arith.constant 0 : index
    %47 = vector.load %arg14[%c0_35, %c0_36] : memref<1x128xf32, #tpu.memory_space<vmem>>, vector<1x128xf32>
    tpu.vector_store %arg14[%c0_35, %c0_36], %46 {strides = array<i32>} : memref<1x128xf32, #tpu.memory_space<vmem>>, vector<1x128xf32>,
    return
  }
  func.func @transform_0(%arg0: i32) -> (i32, i32) {
    %c0_i32 = arith.constant 0 : i32
    %c0_i32_0 = arith.constant 0 : i32
    return %c0_i32, %arg0 : i32, i32
  }
  func.func @transform_1(%arg0: i32) -> (i32, i32) {
    %c0_i32 = arith.constant 0 : i32
    %c0_i32_0 = arith.constant 0 : i32
    %c0_i32_1 = arith.constant 0 : i32
    return %c0_i32, %c0_i32_0 : i32, i32
  }
  func.func @transform_2(%arg0: i32) -> (i32, i32) {
    %c0_i32 = arith.constant 0 : i32
    %c0_i32_0 = arith.constant 0 : i32
    %c0_i32_1 = arith.constant 0 : i32
    return %c0_i32, %c0_i32_0 : i32, i32
  }
  func.func @transform_3(%arg0: i32) -> (i32, i32) {
    %c0_i32 = arith.constant 0 : i32
    %c0_i32_0 = arith.constant 0 : i32
    %c0_i32_1 = arith.constant 0 : i32
    return %c0_i32, %c0_i32_0 : i32, i32
  }
  func.func @transform_4(%arg0: i32) -> (i32, i32) {
    %c0_i32 = arith.constant 0 : i32
    %c0_i32_0 = arith.constant 0 : i32
    %c0_i32_1 = arith.constant 0 : i32
    return %c0_i32, %c0_i32_0 : i32, i32
  }
  func.func @transform_5(%arg0: i32) -> (i32, i32) {
    %c0_i32 = arith.constant 0 : i32
    %c0_i32_0 = arith.constant 0 : i32
    %c0_i32_1 = arith.constant 0 : i32
    return %c0_i32, %c0_i32_0 : i32, i32
  }
  func.func @transform_6(%arg0: i32) -> (i32, i32) {
    %c0_i32 = arith.constant 0 : i32
    %c0_i32_0 = arith.constant 0 : i32
    %c0_i32_1 = arith.constant 0 : i32
    return %c0_i32, %c0_i32_0 : i32, i32
  }
  func.func @transform_7(%arg0: i32) -> (i32, i32) {
    %c0_i32 = arith.constant 0 : i32
    %c0_i32_0 = arith.constant 0 : i32
    %c0_i32_1 = arith.constant 0 : i32
    return %c0_i32, %c0_i32_0 : i32, i32
  }
  func.func @transform_8(%arg0: i32) -> (i32, i32) {
    %c0_i32 = arith.constant 0 : i32
    %c0_i32_0 = arith.constant 0 : i32
    %c0_i32_1 = arith.constant 0 : i32
    return %c0_i32, %c0_i32_0 : i32, i32
  }
  func.func @transform_9(%arg0: i32) -> (i32, i32) {
    %c0_i32 = arith.constant 0 : i32
    %c0_i32_0 = arith.constant 0 : i32
    %c0_i32_1 = arith.constant 0 : i32
    return %c0_i32, %c0_i32_0 : i32, i32
  }
  func.func @transform_10(%arg0: i32) -> (i32, i32) {
    %c0_i32 = arith.constant 0 : i32
    %c0_i32_0 = arith.constant 0 : i32
    %c0_i32_1 = arith.constant 0 : i32
    return %c0_i32, %c0_i32_0 : i32, i32
  }
  func.func @transform_11(%arg0: i32) -> (i32, i32) {
    %c0_i32 = arith.constant 0 : i32
    %c0_i32_0 = arith.constant 0 : i32
    %c0_i32_1 = arith.constant 0 : i32
    return %c0_i32, %c0_i32_0 : i32, i32
  }
  func.func @transform_12(%arg0: i32) -> (i32, i32) {
    %c0_i32 = arith.constant 0 : i32
    %c0_i32_0 = arith.constant 0 : i32
    %c0_i32_1 = arith.constant 0 : i32
    return %c0_i32, %c0_i32_0 : i32, i32
  }
  func.func @transform_13(%arg0: i32) -> (i32, i32) {
    %c0_i32 = arith.constant 0 : i32
    %c0_i32_0 = arith.constant 0 : i32
    return %c0_i32, %arg0 : i32, i32
  }
}

</mosaic_0001>

<llo_original>
// kernel: nngrid_forward.1
$region0: #{nngrid_forward.1}
  #allocation0 [shape = 'u32[]', space=smem, size = 0x4, offset = 0x4, fixed_abs, tag = 'smem constant byte address 0x4 - core index']
  #allocation1 [shape = 'u32[72,128]{1,0:T(1,128)}', space=vmem, size = 0x9000, scoped, tag = 'internal scratch']
  #allocation2 [shape = 'f32[1,1]{1,0:T(1,128)S(1)}', space=vmem, size = 0x200, scoped, tag = 'scoped memory for nngrid_forward.1']
  %s0 = inlined_call_operand.vmem [shape: bf16[75,128], index: 0, kind: input, shape index: {}]
  %s1 = inlined_call_operand.vmem [shape: bf16[128,75], index: 1, kind: input, shape index: {}]
  %s2 = inlined_call_operand.vmem [shape: f32[128,1], index: 2, kind: input, shape index: {}]
  %s3 = inlined_call_operand.vmem [shape: bf16[128,128], index: 3, kind: input, shape index: {}]
  %s4 = inlined_call_operand.vmem [shape: f32[128,1], index: 4, kind: input, shape index: {}]
  %s5 = inlined_call_operand.vmem [shape: bf16[184,128], index: 5, kind: input, shape index: {}]
  %s6 = inlined_call_operand.vmem [shape: f32[184,1], index: 6, kind: input, shape index: {}]
  %s7 = inlined_call_operand.vmem [shape: bf16[96,184], index: 7, kind: input, shape index: {}]
  %s8 = inlined_call_operand.vmem [shape: f32[96,1], index: 8, kind: input, shape index: {}]
  %s9 = inlined_call_operand.vmem [shape: bf16[48,96], index: 9, kind: input, shape index: {}]
  %s10 = inlined_call_operand.vmem [shape: f32[48,1], index: 10, kind: input, shape index: {}]
  %s11 = inlined_call_operand.vmem [shape: bf16[1,48], index: 11, kind: input, shape index: {}]
  %s12 = inlined_call_operand.<no memory space> [shape: f32[1,1], index: 12, kind: input, shape index: {}]
  %s13 = inlined_call_operand.vmem [shape: f32[1,128], index: 13, kind: output, shape index: {}]
  %s14 = sld [smem:[#allocation0]]
  $region62: #{nngrid_forward.1} parent=0
    _
  %s16 = ssub.s32 1, %s14
  %s17 = scalar_select 0, %s16, %s14
  %v18 = vstv %s12
  %19 = vst [vmem:[#allocation2] sm:$0x1] %v18
  // Predicated region
  $region2: #{nngrid_forward.1} parent=0 // pred_check
    _
  $region3: #{nngrid_forward.1} parent=0 // pred_check_branch
    %21 = sbr.rel (0) target = $region5
  $region4: #{nngrid_forward.1} parent=0 // pred_region
    _
  $region5: #{nngrid_forward.1} parent=0 // pred_fallthru
    _
  // Predicated region
  $region6: #{nngrid_forward.1} parent=0 // pred_check
    _
  $region7: #{nngrid_forward.1} parent=0 // pred_check_branch
    %23 = sbr.rel (0) target = $region9
  $region8: #{nngrid_forward.1} parent=0 // pred_region
    _
  $region9: #{nngrid_forward.1} parent=0 // pred_fallthru
    _
  // Predicated region
  $region10: #{nngrid_forward.1} parent=0 // pred_check
    _
  $region11: #{nngrid_forward.1} parent=0 // pred_check_branch
    %25 = sbr.rel (0) target = $region13
  $region12: #{nngrid_forward.1} parent=0 // pred_region
    _
  $region13: #{nngrid_forward.1} parent=0 // pred_fallthru
    _
  // Predicated region
  $region14: #{nngrid_forward.1} parent=0 // pred_check
    _
  $region15: #{nngrid_forward.1} parent=0 // pred_check_branch
    %27 = sbr.rel (0) target = $region17
  $region16: #{nngrid_forward.1} parent=0 // pred_region
    _
  $region17: #{nngrid_forward.1} parent=0 // pred_fallthru
    _
  // Predicated region
  $region18: #{nngrid_forward.1} parent=0 // pred_check
    _
  $region19: #{nngrid_forward.1} parent=0 // pred_check_branch
    %29 = sbr.rel (0) target = $region21
  $region20: #{nngrid_forward.1} parent=0 // pred_region
    _
  $region21: #{nngrid_forward.1} parent=0 // pred_fallthru
    _
  // Predicated region
  $region22: #{nngrid_forward.1} parent=0 // pred_check
    _
  $region23: #{nngrid_forward.1} parent=0 // pred_check_branch
    %31 = sbr.rel (0) target = $region25
  $region24: #{nngrid_forward.1} parent=0 // pred_region
    _
  $region25: #{nngrid_forward.1} parent=0 // pred_fallthru
    _
  // Predicated region
  $region26: #{nngrid_forward.1} parent=0 // pred_check
    _
  $region27: #{nngrid_forward.1} parent=0 // pred_check_branch
    %33 = sbr.rel (0) target = $region29
  $region28: #{nngrid_forward.1} parent=0 // pred_region
    _
  $region29: #{nngrid_forward.1} parent=0 // pred_fallthru
    _
  // Predicated region
  $region30: #{nngrid_forward.1} parent=0 // pred_check
    _
  $region31: #{nngrid_forward.1} parent=0 // pred_check_branch
    %35 = sbr.rel (0) target = $region33
  $region32: #{nngrid_forward.1} parent=0 // pred_region
    _
  $region33: #{nngrid_forward.1} parent=0 // pred_fallthru
    _
  // Predicated region
  $region34: #{nngrid_forward.1} parent=0 // pred_check
    _
  $region35: #{nngrid_forward.1} parent=0 // pred_check_branch
    %37 = sbr.rel (0) target = $region37
  $region36: #{nngrid_forward.1} parent=0 // pred_region
    _
  $region37: #{nngrid_forward.1} parent=0 // pred_fallthru
    _
  // Predicated region
  $region38: #{nngrid_forward.1} parent=0 // pred_check
    _
  $region39: #{nngrid_forward.1} parent=0 // pred_check_branch
    %39 = sbr.rel (0) target = $region41
  $region40: #{nngrid_forward.1} parent=0 // pred_region
    _
  $region41: #{nngrid_forward.1} parent=0 // pred_fallthru
    _
  // Predicated region
  $region42: #{nngrid_forward.1} parent=0 // pred_check
    _
  $region43: #{nngrid_forward.1} parent=0 // pred_check_branch
    %41 = sbr.rel (0) target = $region45
  $region44: #{nngrid_forward.1} parent=0 // pred_region
    _
  $region45: #{nngrid_forward.1} parent=0 // pred_fallthru
    _
  // Predicated region
  $region46: #{nngrid_forward.1} parent=0 // pred_check
    _
  $region47: #{nngrid_forward.1} parent=0 // pred_check_branch
    %43 = sbr.rel (0) target = $region49
  $region48: #{nngrid_forward.1} parent=0 // pred_region
    _
  $region49: #{nngrid_forward.1} parent=0 // pred_fallthru
    _
  // Predicated region
  $region50: #{nngrid_forward.1} parent=0 // pred_check
    _
  $region51: #{nngrid_forward.1} parent=0 // pred_check_branch
    %45 = sbr.rel (0) target = $region53
  $region52: #{nngrid_forward.1} parent=0 // pred_region
    _
  $region53: #{nngrid_forward.1} parent=0 // pred_fallthru
    _
  %v47 = vld [vmem:[%s0] sm:$0xf]
  %v48 = vld [vmem:[%s0 + $0x4] sm:$0xf]
  %v49 = vld [vmem:[%s0 + $0x8] sm:$0xf]
  %v50 = vld [vmem:[%s0 + $0xc] sm:$0xf]
  %v51 = vld [vmem:[%s0 + $0x10] sm:$0xf]
  %v52 = vld [vmem:[%s0 + $0x14] sm:$0xf]
  %v53 = vld [vmem:[%s0 + $0x18] sm:$0xf]
  %v54 = vld [vmem:[%s0 + $0x1c] sm:$0xf]
  %v55 = vld [vmem:[%s0 + $0x20] sm:$0xf]
  %v56 = vld [vmem:[%s0 + $0x24] sm:$0x3]
  %v57 = vld [vmem:[%s1] sm:$0xf]
  %v58 = vld [vmem:[%s1 + $0x4] sm:$0xf]
  %v59 = vld [vmem:[%s1 + $0x8] sm:$0xf]
  %v60 = vld [vmem:[%s1 + $0xc] sm:$0xf]
  %v61 = vld [vmem:[%s1 + $0x10] sm:$0xf]
  %v62 = vld [vmem:[%s1 + $0x14] sm:$0xf]
  %v63 = vld [vmem:[%s1 + $0x18] sm:$0xf]
  %v64 = vld [vmem:[%s1 + $0x1c] sm:$0xf]
  %v65 = vld [vmem:[%s1 + $0x20] sm:$0xf]
  %v66 = vld [vmem:[%s1 + $0x24] sm:$0xf]
  %v67 = vld [vmem:[%s1 + $0x28] sm:$0xf]
  %v68 = vld [vmem:[%s1 + $0x2c] sm:$0xf]
  %v69 = vld [vmem:[%s1 + $0x30] sm:$0xf]
  %v70 = vld [vmem:[%s1 + $0x34] sm:$0xf]
  %v71 = vld [vmem:[%s1 + $0x38] sm:$0xf]
  %v72 = vld [vmem:[%s1 + $0x3c] sm:$0xf]
  %v73 = vld [vmem:[%s2] sm:$0xff]
  %v74 = vld [vmem:[%s2 + $0x8] sm:$0xff]
  %v75 = vld [vmem:[%s2 + $0x10] sm:$0xff]
  %v76 = vld [vmem:[%s2 + $0x18] sm:$0xff]
  %v77 = vld [vmem:[%s2 + $0x20] sm:$0xff]
  %v78 = vld [vmem:[%s2 + $0x28] sm:$0xff]
  %v79 = vld [vmem:[%s2 + $0x30] sm:$0xff]
  %v80 = vld [vmem:[%s2 + $0x38] sm:$0xff]
  %v81 = vld [vmem:[%s2 + $0x40] sm:$0xff]
  %v82 = vld [vmem:[%s2 + $0x48] sm:$0xff]
  %v83 = vld [vmem:[%s2 + $0x50] sm:$0xff]
  %v84 = vld [vmem:[%s2 + $0x58] sm:$0xff]
  %v85 = vld [vmem:[%s2 + $0x60] sm:$0xff]
  %v86 = vld [vmem:[%s2 + $0x68] sm:$0xff]
  %v87 = vld [vmem:[%s2 + $0x70] sm:$0xff]
  %v88 = vld [vmem:[%s2 + $0x78] sm:$0xff]
  %90 = vset.pattern.permute.xlu0 0
  %91 = vperm.xlu0 %90, %v73
  %v92 = vpop.permute.xlu0 %91
  %95 = vset.pattern.permute.xlu0 0
  %96 = vperm.xlu0 %95, %v74
  %v97 = vpop.permute.xlu0 %96
  %100 = vset.pattern.permute.xlu0 0
  %101 = vperm.xlu0 %100, %v75
  %v102 = vpop.permute.xlu0 %101
  %105 = vset.pattern.permute.xlu0 0
  %106 = vperm.xlu0 %105, %v76
  %v107 = vpop.permute.xlu0 %106
  %110 = vset.pattern.permute.xlu0 0
  %111 = vperm.xlu0 %110, %v77
  %v112 = vpop.permute.xlu0 %111
  %115 = vset.pattern.permute.xlu0 0
  %116 = vperm.xlu0 %115, %v78
  %v117 = vpop.permute.xlu0 %116
  %120 = vset.pattern.permute.xlu0 0
  %121 = vperm.xlu0 %120, %v79
  %v122 = vpop.permute.xlu0 %121
  %125 = vset.pattern.permute.xlu0 0
  %126 = vperm.xlu0 %125, %v80
  %v127 = vpop.permute.xlu0 %126
  %130 = vset.pattern.permute.xlu0 0
  %131 = vperm.xlu0 %130, %v81
  %v132 = vpop.permute.xlu0 %131
  %135 = vset.pattern.permute.xlu0 0
  %136 = vperm.xlu0 %135, %v82
  %v137 = vpop.permute.xlu0 %136
  %140 = vset.pattern.permute.xlu0 0
  %141 = vperm.xlu0 %140, %v83
  %v142 = vpop.permute.xlu0 %141
  %145 = vset.pattern.permute.xlu0 0
  %146 = vperm.xlu0 %145, %v84
  %v147 = vpop.permute.xlu0 %146
  %150 = vset.pattern.permute.xlu0 0
  %151 = vperm.xlu0 %150, %v85
  %v152 = vpop.permute.xlu0 %151
  %155 = vset.pattern.permute.xlu0 0
  %156 = vperm.xlu0 %155, %v86
  %v157 = vpop.permute.xlu0 %156
  %160 = vset.pattern.permute.xlu0 0
  %161 = vperm.xlu0 %160, %v87
  %v162 = vpop.permute.xlu0 %161
  %165 = vset.pattern.permute.xlu0 0
  %166 = vperm.xlu0 %165, %v88
  %v167 = vpop.permute.xlu0 %166
  %v185 = vunpack.c.l.b16 %v57
  %v186 = vunpack.c.l.b16 %v58
  %v187 = vunpack.c.l.b16 %v59
  %v188 = vunpack.c.l.b16 %v60
  %v189 = vunpack.c.l.b16 %v61
  %v190 = vunpack.c.l.b16 %v62
  %v191 = vunpack.c.l.b16 %v63
  %v192 = vunpack.c.l.b16 %v64
  %v193 = vunpack.c.l.b16 %v65
  %v194 = vunpack.c.l.b16 %v66
  %v195 = vunpack.c.l.b16 %v67
  %v196 = vunpack.c.l.b16 %v68
  %v197 = vunpack.c.l.b16 %v69
  %v198 = vunpack.c.l.b16 %v70
  %v199 = vunpack.c.l.b16 %v71
  %v200 = vunpack.c.l.b16 %v72
  %v201 = vpack.c.b16 %v186, %v185
  %v202 = vpack.c.b16 %v188, %v187
  %v203 = vpack.c.b16 %v190, %v189
  %v204 = vpack.c.b16 %v192, %v191
  %v205 = vpack.c.b16 %v194, %v193
  %v206 = vpack.c.b16 %v196, %v195
  %v207 = vpack.c.b16 %v198, %v197
  %v208 = vpack.c.b16 %v200, %v199
  %v219 = vunpack.c.l.b16 %v47
  %v220 = vunpack.c.l.b16 %v48
  %v221 = vunpack.c.l.b16 %v49
  %v222 = vunpack.c.l.b16 %v50
  %v223 = vunpack.c.l.b16 %v51
  %v224 = vunpack.c.l.b16 %v52
  %v225 = vunpack.c.l.b16 %v53
  %v226 = vunpack.c.l.b16 %v54
  %v227 = vunpack.c.l.b16 %v55
  %v228 = vunpack.c.l.b16 %v56
  %v229 = vpack.c.b16 %v220, %v219
  %v230 = vpack.c.b16 %v222, %v221
  %v231 = vpack.c.b16 %v224, %v223
  %v232 = vpack.c.b16 %v226, %v225
  %v233 = vpack.c.b16 %v228, %v227
  %vm238 = vcmask 613376
  %v240 = vsel %vm238, %v201, 0
  %v243 = vsel %vm238, %v202, 0
  %v246 = vsel %vm238, %v203, 0
  %v249 = vsel %vm238, %v204, 0
  %v252 = vsel %vm238, %v205, 0
  %v255 = vsel %vm238, %v206, 0
  %v258 = vsel %vm238, %v207, 0
  %v261 = vsel %vm238, %v208, 0
  %vm263 = vcmask 1044480
  %vm264 = vcmask 1045504
  %v265 = vsel %vm263, 4294967295, 65535
  %v266 = vsel %vm264, %v265, 0
  %v268 = vand.u32 %v233, %v266
  %270 = vmatpush.bf16.msra.mxu0 0
  %271 = vmatpush.bf16.msra.mxu0 0
  %272 = vmatpush.bf16.msra.mxu0 0
  %273 = vmatpush.bf16.msra.mxu0 %v268
  %274 = vmatpush.bf16.msra.mxu0 %v232
  %275 = vmatpush.bf16.msra.mxu0 %v231
  %276 = vmatpush.bf16.msra.mxu0 %v230
  %277 = vmatpush.bf16.msra.mxu0 %v229
  %278 = vmatmul.bf16.gmra.mxu0 %v240
  %v279 = vpop.f32.mrf.mxu0
  %v280 = vadd.f32 %v92, %v279
  %v281 = vpop.f32.mrf.mxu0
  %v282 = vadd.f32 %v97, %v281
  %283 = vmatmul.bf16.gmra.mxu0 %v243
  %v284 = vpop.f32.mrf.mxu0
  %v285 = vadd.f32 %v102, %v284
  %v286 = vpop.f32.mrf.mxu0
  %v287 = vadd.f32 %v107, %v286
  %288 = vmatmul.bf16.gmra.mxu0 %v246
  %v289 = vpop.f32.mrf.mxu0
  %v290 = vadd.f32 %v112, %v289
  %v291 = vpop.f32.mrf.mxu0
  %v292 = vadd.f32 %v117, %v291
  %293 = vmatmul.bf16.gmra.mxu0 %v249
  %v294 = vpop.f32.mrf.mxu0
  %v295 = vadd.f32 %v122, %v294
  %v296 = vpop.f32.mrf.mxu0
  %v297 = vadd.f32 %v127, %v296
  %298 = vmatmul.bf16.gmra.mxu0 %v252
  %v299 = vpop.f32.mrf.mxu0
  %v300 = vadd.f32 %v132, %v299
  %v301 = vpop.f32.mrf.mxu0
  %v302 = vadd.f32 %v137, %v301
  %303 = vmatmul.bf16.gmra.mxu0 %v255
  %v304 = vpop.f32.mrf.mxu0
  %v305 = vadd.f32 %v142, %v304
  %v306 = vpop.f32.mrf.mxu0
  %v307 = vadd.f32 %v147, %v306
  %308 = vmatmul.bf16.gmra.mxu0 %v258
  %v309 = vpop.f32.mrf.mxu0
  %v310 = vadd.f32 %v152, %v309
  %v311 = vpop.f32.mrf.mxu0
  %v312 = vadd.f32 %v157, %v311
  %313 = vmatmul.bf16.gmra.mxu0 %v261
  %v314 = vpop.f32.mrf.mxu0
  %v315 = vadd.f32 %v162, %v314
  %v316 = vpop.f32.mrf.mxu0
  %v317 = vadd.f32 %v167, %v316
  %318 = vdwg.mxu0
  %v319 = vmax.f32 %v280, 0.0
  %v320 = vmax.f32 %v282, 0.0
  %v321 = vmax.f32 %v285, 0.0
  %v322 = vmax.f32 %v287, 0.0
  %v323 = vmax.f32 %v290, 0.0
  %v324 = vmax.f32 %v292, 0.0
  %v325 = vmax.f32 %v295, 0.0
  %v326 = vmax.f32 %v297, 0.0
  %v327 = vmax.f32 %v300, 0.0
  %v328 = vmax.f32 %v302, 0.0
  %v329 = vmax.f32 %v305, 0.0
  %v330 = vmax.f32 %v307, 0.0
  %v331 = vmax.f32 %v310, 0.0
  %v332 = vmax.f32 %v312, 0.0
  %v333 = vmax.f32 %v315, 0.0
  %v334 = vmax.f32 %v317, 0.0
  %v335 = vpack.c.bf16 %v320, %v319
  %v336 = vpack.c.bf16 %v322, %v321
  %v337 = vpack.c.bf16 %v324, %v323
  %v338 = vpack.c.bf16 %v326, %v325
  %v339 = vpack.c.bf16 %v328, %v327
  %v340 = vpack.c.bf16 %v330, %v329
  %v341 = vpack.c.bf16 %v332, %v331
  %v342 = vpack.c.bf16 %v334, %v333
  %v343 = vld [vmem:[%s3] sm:$0xf]
  %v344 = vld [vmem:[%s3 + $0x4] sm:$0xf]
  %v345 = vld [vmem:[%s3 + $0x8] sm:$0xf]
  %v346 = vld [vmem:[%s3 + $0xc] sm:$0xf]
  %v347 = vld [vmem:[%s3 + $0x10] sm:$0xf]
  %v348 = vld [vmem:[%s3 + $0x14] sm:$0xf]
  %v349 = vld [vmem:[%s3 + $0x18] sm:$0xf]
  %v350 = vld [vmem:[%s3 + $0x1c] sm:$0xf]
  %v351 = vld [vmem:[%s3 + $0x20] sm:$0xf]
  %v352 = vld [vmem:[%s3 + $0x24] sm:$0xf]
  %v353 = vld [vmem:[%s3 + $0x28] sm:$0xf]
  %v354 = vld [vmem:[%s3 + $0x2c] sm:$0xf]
  %v355 = vld [vmem:[%s3 + $0x30] sm:$0xf]
  %v356 = vld [vmem:[%s3 + $0x34] sm:$0xf]
  %v357 = vld [vmem:[%s3 + $0x38] sm:$0xf]
  %v358 = vld [vmem:[%s3 + $0x3c] sm:$0xf]
  %v359 = vld [vmem:[%s4] sm:$0xff]
  %v360 = vld [vmem:[%s4 + $0x8] sm:$0xff]
  %v361 = vld [vmem:[%s4 + $0x10] sm:$0xff]
  %v362 = vld [vmem:[%s4 + $0x18] sm:$0xff]
  %v363 = vld [vmem:[%s4 + $0x20] sm:$0xff]
  %v364 = vld [vmem:[%s4 + $0x28] sm:$0xff]
  %v365 = vld [vmem:[%s4 + $0x30] sm:$0xff]
  %v366 = vld [vmem:[%s4 + $0x38] sm:$0xff]
  %v367 = vld [vmem:[%s4 + $0x40] sm:$0xff]
  %v368 = vld [vmem:[%s4 + $0x48] sm:$0xff]
  %v369 = vld [vmem:[%s4 + $0x50] sm:$0xff]
  %v370 = vld [vmem:[%s4 + $0x58] sm:$0xff]
  %v371 = vld [vmem:[%s4 + $0x60] sm:$0xff]
  %v372 = vld [vmem:[%s4 + $0x68] sm:$0xff]
  %v373 = vld [vmem:[%s4 + $0x70] sm:$0xff]
  %v374 = vld [vmem:[%s4 + $0x78] sm:$0xff]
  %376 = vset.pattern.permute.xlu0 0
  %377 = vperm.xlu0 %376, %v359
  %v378 = vpop.permute.xlu0 %377
  %381 = vset.pattern.permute.xlu0 0
  %382 = vperm.xlu0 %381, %v360
  %v383 = vpop.permute.xlu0 %382
  %386 = vset.pattern.permute.xlu0 0
  %387 = vperm.xlu0 %386, %v361
  %v388 = vpop.permute.xlu0 %387
  %391 = vset.pattern.permute.xlu0 0
  %392 = vperm.xlu0 %391, %v362
  %v393 = vpop.permute.xlu0 %392
  %396 = vset.pattern.permute.xlu0 0
  %397 = vperm.xlu0 %396, %v363
  %v398 = vpop.permute.xlu0 %397
  %401 = vset.pattern.permute.xlu0 0
  %402 = vperm.xlu0 %401, %v364
  %v403 = vpop.permute.xlu0 %402
  %406 = vset.pattern.permute.xlu0 0
  %407 = vperm.xlu0 %406, %v365
  %v408 = vpop.permute.xlu0 %407
  %411 = vset.pattern.permute.xlu0 0
  %412 = vperm.xlu0 %411, %v366
  %v413 = vpop.permute.xlu0 %412
  %416 = vset.pattern.permute.xlu0 0
  %417 = vperm.xlu0 %416, %v367
  %v418 = vpop.permute.xlu0 %417
  %421 = vset.pattern.permute.xlu0 0
  %422 = vperm.xlu0 %421, %v368
  %v423 = vpop.permute.xlu0 %422
  %426 = vset.pattern.permute.xlu0 0
  %427 = vperm.xlu0 %426, %v369
  %v428 = vpop.permute.xlu0 %427
  %431 = vset.pattern.permute.xlu0 0
  %432 = vperm.xlu0 %431, %v370
  %v433 = vpop.permute.xlu0 %432
  %436 = vset.pattern.permute.xlu0 0
  %437 = vperm.xlu0 %436, %v371
  %v438 = vpop.permute.xlu0 %437
  %441 = vset.pattern.permute.xlu0 0
  %442 = vperm.xlu0 %441, %v372
  %v443 = vpop.permute.xlu0 %442
  %446 = vset.pattern.permute.xlu0 0
  %447 = vperm.xlu0 %446, %v373
  %v448 = vpop.permute.xlu0 %447
  %451 = vset.pattern.permute.xlu0 0
  %452 = vperm.xlu0 %451, %v374
  %v453 = vpop.permute.xlu0 %452
  %v471 = vunpack.c.l.b16 %v343
  %v472 = vunpack.c.l.b16 %v344
  %v473 = vunpack.c.l.b16 %v345
  %v474 = vunpack.c.l.b16 %v346
  %v475 = vunpack.c.l.b16 %v347
  %v476 = vunpack.c.l.b16 %v348
  %v477 = vunpack.c.l.b16 %v349
  %v478 = vunpack.c.l.b16 %v350
  %v479 = vunpack.c.l.b16 %v351
  %v480 = vunpack.c.l.b16 %v352
  %v481 = vunpack.c.l.b16 %v353
  %v482 = vunpack.c.l.b16 %v354
  %v483 = vunpack.c.l.b16 %v355
  %v484 = vunpack.c.l.b16 %v356
  %v485 = vunpack.c.l.b16 %v357
  %v486 = vunpack.c.l.b16 %v358
  %v487 = vpack.c.b16 %v472, %v471
  %v488 = vpack.c.b16 %v474, %v473
  %v489 = vpack.c.b16 %v476, %v475
  %v490 = vpack.c.b16 %v478, %v477
  %v491 = vpack.c.b16 %v480, %v479
  %v492 = vpack.c.b16 %v482, %v481
  %v493 = vpack.c.b16 %v484, %v483
  %v494 = vpack.c.b16 %v486, %v485
  %503 = vmatpush.bf16.msra.mxu0 %v342
  %504 = vmatpush.bf16.msra.mxu0 %v341
  %505 = vmatpush.bf16.msra.mxu0 %v340
  %506 = vmatpush.bf16.msra.mxu0 %v339
  %507 = vmatpush.bf16.msra.mxu0 %v338
  %508 = vmatpush.bf16.msra.mxu0 %v337
  %509 = vmatpush.bf16.msra.mxu0 %v336
  %510 = vmatpush.bf16.msra.mxu0 %v335
  %511 = vmatmul.bf16.gmra.mxu0 %v487
  %v512 = vpop.f32.mrf.mxu0
  %v513 = vadd.f32 %v378, %v512
  %v514 = vpop.f32.mrf.mxu0
  %v515 = vadd.f32 %v383, %v514
  %516 = vmatmul.bf16.gmra.mxu0 %v488
  %v517 = vpop.f32.mrf.mxu0
  %v518 = vadd.f32 %v388, %v517
  %v519 = vpop.f32.mrf.mxu0
  %v520 = vadd.f32 %v393, %v519
  %521 = vmatmul.bf16.gmra.mxu0 %v489
  %v522 = vpop.f32.mrf.mxu0
  %v523 = vadd.f32 %v398, %v522
  %v524 = vpop.f32.mrf.mxu0
  %v525 = vadd.f32 %v403, %v524
  %526 = vmatmul.bf16.gmra.mxu0 %v490
  %v527 = vpop.f32.mrf.mxu0
  %v528 = vadd.f32 %v408, %v527
  %v529 = vpop.f32.mrf.mxu0
  %v530 = vadd.f32 %v413, %v529
  %531 = vmatmul.bf16.gmra.mxu0 %v491
  %v532 = vpop.f32.mrf.mxu0
  %v533 = vadd.f32 %v418, %v532
  %v534 = vpop.f32.mrf.mxu0
  %v535 = vadd.f32 %v423, %v534
  %536 = vmatmul.bf16.gmra.mxu0 %v492
  %v537 = vpop.f32.mrf.mxu0
  %v538 = vadd.f32 %v428, %v537
  %v539 = vpop.f32.mrf.mxu0
  %v540 = vadd.f32 %v433, %v539
  %541 = vmatmul.bf16.gmra.mxu0 %v493
  %v542 = vpop.f32.mrf.mxu0
  %v543 = vadd.f32 %v438, %v542
  %v544 = vpop.f32.mrf.mxu0
  %v545 = vadd.f32 %v443, %v544
  %546 = vmatmul.bf16.gmra.mxu0 %v494
  %v547 = vpop.f32.mrf.mxu0
  %v548 = vadd.f32 %v448, %v547
  %v549 = vpop.f32.mrf.mxu0
  %v550 = vadd.f32 %v453, %v549
  %551 = vdwg.mxu0
  %v552 = vmax.f32 %v513, 0.0
  %v553 = vmax.f32 %v515, 0.0
  %v554 = vmax.f32 %v518, 0.0
  %v555 = vmax.f32 %v520, 0.0
  %v556 = vmax.f32 %v523, 0.0
  %v557 = vmax.f32 %v525, 0.0
  %v558 = vmax.f32 %v528, 0.0
  %v559 = vmax.f32 %v530, 0.0
  %v560 = vmax.f32 %v533, 0.0
  %v561 = vmax.f32 %v535, 0.0
  %v562 = vmax.f32 %v538, 0.0
  %v563 = vmax.f32 %v540, 0.0
  %v564 = vmax.f32 %v543, 0.0
  %v565 = vmax.f32 %v545, 0.0
  %v566 = vmax.f32 %v548, 0.0
  %v567 = vmax.f32 %v550, 0.0
  %v568 = vpack.c.bf16 %v553, %v552
  %v569 = vpack.c.bf16 %v555, %v554
  %v570 = vpack.c.bf16 %v557, %v556
  %v571 = vpack.c.bf16 %v559, %v558
  %v572 = vpack.c.bf16 %v561, %v560
  %v573 = vpack.c.bf16 %v563, %v562
  %v574 = vpack.c.bf16 %v565, %v564
  %v575 = vpack.c.bf16 %v567, %v566
  %v576 = vld [vmem:[%s5] sm:$0xf]
  %v577 = vld [vmem:[%s5 + $0x4] sm:$0xf]
  %v578 = vld [vmem:[%s5 + $0x8] sm:$0xf]
  %v579 = vld [vmem:[%s5 + $0xc] sm:$0xf]
  %v580 = vld [vmem:[%s5 + $0x10] sm:$0xf]
  %v581 = vld [vmem:[%s5 + $0x14] sm:$0xf]
  %v582 = vld [vmem:[%s5 + $0x18] sm:$0xf]
  %v583 = vld [vmem:[%s5 + $0x1c] sm:$0xf]
  %v584 = vld [vmem:[%s5 + $0x20] sm:$0xf]
  %v585 = vld [vmem:[%s5 + $0x24] sm:$0xf]
  %v586 = vld [vmem:[%s5 + $0x28] sm:$0xf]
  %v587 = vld [vmem:[%s5 + $0x2c] sm:$0xf]
  %v588 = vld [vmem:[%s5 + $0x30] sm:$0xf]
  %v589 = vld [vmem:[%s5 + $0x34] sm:$0xf]
  %v590 = vld [vmem:[%s5 + $0x38] sm:$0xf]
  %v591 = vld [vmem:[%s5 + $0x3c] sm:$0xf]
  %v592 = vld [vmem:[%s5 + $0x40] sm:$0xf]
  %v593 = vld [vmem:[%s5 + $0x44] sm:$0xf]
  %v594 = vld [vmem:[%s5 + $0x48] sm:$0xf]
  %v595 = vld [vmem:[%s5 + $0x4c] sm:$0xf]
  %v596 = vld [vmem:[%s5 + $0x50] sm:$0xf]
  %v597 = vld [vmem:[%s5 + $0x54] sm:$0xf]
  %v598 = vld [vmem:[%s5 + $0x58] sm:$0xf]
  %v599 = vld [vmem:[%s6] sm:$0xff]
  %v600 = vld [vmem:[%s6 + $0x8] sm:$0xff]
  %v601 = vld [vmem:[%s6 + $0x10] sm:$0xff]
  %v602 = vld [vmem:[%s6 + $0x18] sm:$0xff]
  %v603 = vld [vmem:[%s6 + $0x20] sm:$0xff]
  %v604 = vld [vmem:[%s6 + $0x28] sm:$0xff]
  %v605 = vld [vmem:[%s6 + $0x30] sm:$0xff]
  %v606 = vld [vmem:[%s6 + $0x38] sm:$0xff]
  %v607 = vld [vmem:[%s6 + $0x40] sm:$0xff]
  %v608 = vld [vmem:[%s6 + $0x48] sm:$0xff]
  %v609 = vld [vmem:[%s6 + $0x50] sm:$0xff]
  %v610 = vld [vmem:[%s6 + $0x58] sm:$0xff]
  %v611 = vld [vmem:[%s6 + $0x60] sm:$0xff]
  %v612 = vld [vmem:[%s6 + $0x68] sm:$0xff]
  %v613 = vld [vmem:[%s6 + $0x70] sm:$0xff]
  %v614 = vld [vmem:[%s6 + $0x78] sm:$0xff]
  %v615 = vld [vmem:[%s6 + $0x80] sm:$0xff]
  %v616 = vld [vmem:[%s6 + $0x88] sm:$0xff]
  %v617 = vld [vmem:[%s6 + $0x90] sm:$0xff]
  %v618 = vld [vmem:[%s6 + $0x98] sm:$0xff]
  %v619 = vld [vmem:[%s6 + $0xa0] sm:$0xff]
  %v620 = vld [vmem:[%s6 + $0xa8] sm:$0xff]
  %v621 = vld [vmem:[%s6 + $0xb0] sm:$0xff]
  %623 = vset.pattern.permute.xlu0 0
  %624 = vperm.xlu0 %623, %v599
  %v625 = vpop.permute.xlu0 %624
  %628 = vset.pattern.permute.xlu0 0
  %629 = vperm.xlu0 %628, %v600
  %v630 = vpop.permute.xlu0 %629
  %633 = vset.pattern.permute.xlu0 0
  %634 = vperm.xlu0 %633, %v601
  %v635 = vpop.permute.xlu0 %634
  %638 = vset.pattern.permute.xlu0 0
  %639 = vperm.xlu0 %638, %v602
  %v640 = vpop.permute.xlu0 %639
  %643 = vset.pattern.permute.xlu0 0
  %644 = vperm.xlu0 %643, %v603
  %v645 = vpop.permute.xlu0 %644
  %648 = vset.pattern.permute.xlu0 0
  %649 = vperm.xlu0 %648, %v604
  %v650 = vpop.permute.xlu0 %649
  %653 = vset.pattern.permute.xlu0 0
  %654 = vperm.xlu0 %653, %v605
  %v655 = vpop.permute.xlu0 %654
  %658 = vset.pattern.permute.xlu0 0
  %659 = vperm.xlu0 %658, %v606
  %v660 = vpop.permute.xlu0 %659
  %663 = vset.pattern.permute.xlu0 0
  %664 = vperm.xlu0 %663, %v607
  %v665 = vpop.permute.xlu0 %664
  %668 = vset.pattern.permute.xlu0 0
  %669 = vperm.xlu0 %668, %v608
  %v670 = vpop.permute.xlu0 %669
  %673 = vset.pattern.permute.xlu0 0
  %674 = vperm.xlu0 %673, %v609
  %v675 = vpop.permute.xlu0 %674
  %678 = vset.pattern.permute.xlu0 0
  %679 = vperm.xlu0 %678, %v610
  %v680 = vpop.permute.xlu0 %679
  %683 = vset.pattern.permute.xlu0 0
  %684 = vperm.xlu0 %683, %v611
  %v685 = vpop.permute.xlu0 %684
  %688 = vset.pattern.permute.xlu0 0
  %689 = vperm.xlu0 %688, %v612
  %v690 = vpop.permute.xlu0 %689
  %693 = vset.pattern.permute.xlu0 0
  %694 = vperm.xlu0 %693, %v613
  %v695 = vpop.permute.xlu0 %694
  %698 = vset.pattern.permute.xlu0 0
  %699 = vperm.xlu0 %698, %v614
  %v700 = vpop.permute.xlu0 %699
  %703 = vset.pattern.permute.xlu0 0
  %704 = vperm.xlu0 %703, %v615
  %v705 = vpop.permute.xlu0 %704
  %708 = vset.pattern.permute.xlu0 0
  %709 = vperm.xlu0 %708, %v616
  %v710 = vpop.permute.xlu0 %709
  %713 = vset.pattern.permute.xlu0 0
  %714 = vperm.xlu0 %713, %v617
  %v715 = vpop.permute.xlu0 %714
  %718 = vset.pattern.permute.xlu0 0
  %719 = vperm.xlu0 %718, %v618
  %v720 = vpop.permute.xlu0 %719
  %723 = vset.pattern.permute.xlu0 0
  %724 = vperm.xlu0 %723, %v619
  %v725 = vpop.permute.xlu0 %724
  %728 = vset.pattern.permute.xlu0 0
  %729 = vperm.xlu0 %728, %v620
  %v730 = vpop.permute.xlu0 %729
  %733 = vset.pattern.permute.xlu0 0
  %734 = vperm.xlu0 %733, %v621
  %v735 = vpop.permute.xlu0 %734
  %v760 = vunpack.c.l.b16 %v576
  %v761 = vunpack.c.l.b16 %v577
  %v762 = vunpack.c.l.b16 %v578
  %v763 = vunpack.c.l.b16 %v579
  %v764 = vunpack.c.l.b16 %v580
  %v765 = vunpack.c.l.b16 %v581
  %v766 = vunpack.c.l.b16 %v582
  %v767 = vunpack.c.l.b16 %v583
  %v768 = vunpack.c.l.b16 %v584
  %v769 = vunpack.c.l.b16 %v585
  %v770 = vunpack.c.l.b16 %v586
  %v771 = vunpack.c.l.b16 %v587
  %v772 = vunpack.c.l.b16 %v588
  %v773 = vunpack.c.l.b16 %v589
  %v774 = vunpack.c.l.b16 %v590
  %v775 = vunpack.c.l.b16 %v591
  %v776 = vunpack.c.l.b16 %v592
  %v777 = vunpack.c.l.b16 %v593
  %v778 = vunpack.c.l.b16 %v594
  %v779 = vunpack.c.l.b16 %v595
  %v780 = vunpack.c.l.b16 %v596
  %v781 = vunpack.c.l.b16 %v597
  %v782 = vunpack.c.l.b16 %v598
  %v783 = vpack.c.b16 %v761, %v760
  %v784 = vpack.c.b16 %v763, %v762
  %v785 = vpack.c.b16 %v765, %v764
  %v786 = vpack.c.b16 %v767, %v766
  %v787 = vpack.c.b16 %v769, %v768
  %v788 = vpack.c.b16 %v771, %v770
  %v789 = vpack.c.b16 %v773, %v772
  %v790 = vpack.c.b16 %v775, %v774
  %v791 = vpack.c.b16 %v777, %v776
  %v792 = vpack.c.b16 %v779, %v778
  %v793 = vpack.c.b16 %v781, %v780
  %v794 = vpack.c.b16 %v782, %v782
  %807 = vmatpush.bf16.msra.mxu0 %v575
  %808 = vmatpush.bf16.msra.mxu0 %v574
  %809 = vmatpush.bf16.msra.mxu0 %v573
  %810 = vmatpush.bf16.msra.mxu0 %v572
  %811 = vmatpush.bf16.msra.mxu0 %v571
  %812 = vmatpush.bf16.msra.mxu0 %v570
  %813 = vmatpush.bf16.msra.mxu0 %v569
  %814 = vmatpush.bf16.msra.mxu0 %v568
  %815 = vmatmul.bf16.gmra.mxu0 %v783
  %v816 = vpop.f32.mrf.mxu0
  %v817 = vadd.f32 %v625, %v816
  %v818 = vpop.f32.mrf.mxu0
  %v819 = vadd.f32 %v630, %v818
  %820 = vmatmul.bf16.gmra.mxu0 %v784
  %v821 = vpop.f32.mrf.mxu0
  %v822 = vadd.f32 %v635, %v821
  %v823 = vpop.f32.mrf.mxu0
  %v824 = vadd.f32 %v640, %v823
  %825 = vmatmul.bf16.gmra.mxu0 %v785
  %v826 = vpop.f32.mrf.mxu0
  %v827 = vadd.f32 %v645, %v826
  %v828 = vpop.f32.mrf.mxu0
  %v829 = vadd.f32 %v650, %v828
  %830 = vmatmul.bf16.gmra.mxu0 %v786
  %v831 = vpop.f32.mrf.mxu0
  %v832 = vadd.f32 %v655, %v831
  %v833 = vpop.f32.mrf.mxu0
  %v834 = vadd.f32 %v660, %v833
  %835 = vmatmul.bf16.gmra.mxu0 %v787
  %v836 = vpop.f32.mrf.mxu0
  %v837 = vadd.f32 %v665, %v836
  %v838 = vpop.f32.mrf.mxu0
  %v839 = vadd.f32 %v670, %v838
  %840 = vmatmul.bf16.gmra.mxu0 %v788
  %v841 = vpop.f32.mrf.mxu0
  %v842 = vadd.f32 %v675, %v841
  %v843 = vpop.f32.mrf.mxu0
  %v844 = vadd.f32 %v680, %v843
  %845 = vmatmul.bf16.gmra.mxu0 %v789
  %v846 = vpop.f32.mrf.mxu0
  %v847 = vadd.f32 %v685, %v846
  %v848 = vpop.f32.mrf.mxu0
  %v849 = vadd.f32 %v690, %v848
  %850 = vmatmul.bf16.gmra.mxu0 %v790
  %v851 = vpop.f32.mrf.mxu0
  %v852 = vadd.f32 %v695, %v851
  %v853 = vpop.f32.mrf.mxu0
  %v854 = vadd.f32 %v700, %v853
  %855 = vmatmul.bf16.gmra.mxu0 %v791
  %v856 = vpop.f32.mrf.mxu0
  %v857 = vadd.f32 %v705, %v856
  %v858 = vpop.f32.mrf.mxu0
  %v859 = vadd.f32 %v710, %v858
  %860 = vmatmul.bf16.gmra.mxu0 %v792
  %v861 = vpop.f32.mrf.mxu0
  %v862 = vadd.f32 %v715, %v861
  %v863 = vpop.f32.mrf.mxu0
  %v864 = vadd.f32 %v720, %v863
  %865 = vmatmul.bf16.gmra.mxu0 %v793
  %v866 = vpop.f32.mrf.mxu0
  %v867 = vadd.f32 %v725, %v866
  %v868 = vpop.f32.mrf.mxu0
  %v869 = vadd.f32 %v730, %v868
  %870 = vmatmul.bf16.gmra.mxu0 %v794
  %v871 = vpop.f32.mrf.mxu0
  %v872 = vadd.f32 %v735, %v871
  %v873 = vpop.f32.mrf.mxu0
  %874 = vdwg.mxu0
  %v875 = vmax.f32 %v817, 0.0
  %v876 = vmax.f32 %v819, 0.0
  %v877 = vmax.f32 %v822, 0.0
  %v878 = vmax.f32 %v824, 0.0
  %v879 = vmax.f32 %v827, 0.0
  %v880 = vmax.f32 %v829, 0.0
  %v881 = vmax.f32 %v832, 0.0
  %v882 = vmax.f32 %v834, 0.0
  %v883 = vmax.f32 %v837, 0.0
  %v884 = vmax.f32 %v839, 0.0
  %v885 = vmax.f32 %v842, 0.0
  %v886 = vmax.f32 %v844, 0.0
  %v887 = vmax.f32 %v847, 0.0
  %v888 = vmax.f32 %v849, 0.0
  %v889 = vmax.f32 %v852, 0.0
  %v890 = vmax.f32 %v854, 0.0
  %v891 = vmax.f32 %v857, 0.0
  %v892 = vmax.f32 %v859, 0.0
  %v893 = vmax.f32 %v862, 0.0
  %v894 = vmax.f32 %v864, 0.0
  %v895 = vmax.f32 %v867, 0.0
  %v896 = vmax.f32 %v869, 0.0
  %v897 = vmax.f32 %v872, 0.0
  %v898 = vpack.c.bf16 %v876, %v875
  %v899 = vpack.c.bf16 %v878, %v877
  %v900 = vpack.c.bf16 %v880, %v879
  %v901 = vpack.c.bf16 %v882, %v881
  %v902 = vpack.c.bf16 %v884, %v883
  %v903 = vpack.c.bf16 %v886, %v885
  %v904 = vpack.c.bf16 %v888, %v887
  %v905 = vpack.c.bf16 %v890, %v889
  %v906 = vpack.c.bf16 %v892, %v891
  %v907 = vpack.c.bf16 %v894, %v893
  %v908 = vpack.c.bf16 %v896, %v895
  %v909 = vpack.c.bf16 %v897, %v897
  %v910 = vld [vmem:[%s7] sm:$0xff]
  %v911 = vld [vmem:[%s7 + $0x8] sm:$0xff]
  %v912 = vld [vmem:[%s7 + $0x10] sm:$0xff]
  %v913 = vld [vmem:[%s7 + $0x18] sm:$0xff]
  %v914 = vld [vmem:[%s7 + $0x20] sm:$0xff]
  %v915 = vld [vmem:[%s7 + $0x28] sm:$0xff]
  %v916 = vld [vmem:[%s7 + $0x30] sm:$0xff]
  %v917 = vld [vmem:[%s7 + $0x38] sm:$0xff]
  %v918 = vld [vmem:[%s7 + $0x40] sm:$0xff]
  %v919 = vld [vmem:[%s7 + $0x48] sm:$0xff]
  %v920 = vld [vmem:[%s7 + $0x50] sm:$0xff]
  %v921 = vld [vmem:[%s7 + $0x58] sm:$0xff]
  %v922 = vld [vmem:[%s8] sm:$0xff]
  %v923 = vld [vmem:[%s8 + $0x8] sm:$0xff]
  %v924 = vld [vmem:[%s8 + $0x10] sm:$0xff]
  %v925 = vld [vmem:[%s8 + $0x18] sm:$0xff]
  %v926 = vld [vmem:[%s8 + $0x20] sm:$0xff]
  %v927 = vld [vmem:[%s8 + $0x28] sm:$0xff]
  %v928 = vld [vmem:[%s8 + $0x30] sm:$0xff]
  %v929 = vld [vmem:[%s8 + $0x38] sm:$0xff]
  %v930 = vld [vmem:[%s8 + $0x40] sm:$0xff]
  %v931 = vld [vmem:[%s8 + $0x48] sm:$0xff]
  %v932 = vld [vmem:[%s8 + $0x50] sm:$0xff]
  %v933 = vld [vmem:[%s8 + $0x58] sm:$0xff]
  %935 = vset.pattern.permute.xlu0 0
  %936 = vperm.xlu0 %935, %v922
  %v937 = vpop.permute.xlu0 %936
  %940 = vset.pattern.permute.xlu0 0
  %941 = vperm.xlu0 %940, %v923
  %v942 = vpop.permute.xlu0 %941
  %945 = vset.pattern.permute.xlu0 0
  %946 = vperm.xlu0 %945, %v924
  %v947 = vpop.permute.xlu0 %946
  %950 = vset.pattern.permute.xlu0 0
  %951 = vperm.xlu0 %950, %v925
  %v952 = vpop.permute.xlu0 %951
  %955 = vset.pattern.permute.xlu0 0
  %956 = vperm.xlu0 %955, %v926
  %v957 = vpop.permute.xlu0 %956
  %960 = vset.pattern.permute.xlu0 0
  %961 = vperm.xlu0 %960, %v927
  %v962 = vpop.permute.xlu0 %961
  %965 = vset.pattern.permute.xlu0 0
  %966 = vperm.xlu0 %965, %v928
  %v967 = vpop.permute.xlu0 %966
  %970 = vset.pattern.permute.xlu0 0
  %971 = vperm.xlu0 %970, %v929
  %v972 = vpop.permute.xlu0 %971
  %975 = vset.pattern.permute.xlu0 0
  %976 = vperm.xlu0 %975, %v930
  %v977 = vpop.permute.xlu0 %976
  %980 = vset.pattern.permute.xlu0 0
  %981 = vperm.xlu0 %980, %v931
  %v982 = vpop.permute.xlu0 %981
  %985 = vset.pattern.permute.xlu0 0
  %986 = vperm.xlu0 %985, %v932
  %v987 = vpop.permute.xlu0 %986
  %990 = vset.pattern.permute.xlu0 0
  %991 = vperm.xlu0 %990, %v933
  %v992 = vpop.permute.xlu0 %991
  %v1006 = vunpack.c.l.b16 %v910
  %v1007 = vunpack.c.h.b16 %v910
  %v1008 = vunpack.c.l.b16 %v911
  %v1009 = vunpack.c.h.b16 %v911
  %v1010 = vunpack.c.l.b16 %v912
  %v1011 = vunpack.c.h.b16 %v912
  %v1012 = vunpack.c.l.b16 %v913
  %v1013 = vunpack.c.h.b16 %v913
  %v1014 = vunpack.c.l.b16 %v914
  %v1015 = vunpack.c.h.b16 %v914
  %v1016 = vunpack.c.l.b16 %v915
  %v1017 = vunpack.c.h.b16 %v915
  %v1018 = vunpack.c.l.b16 %v916
  %v1019 = vunpack.c.h.b16 %v916
  %v1020 = vunpack.c.l.b16 %v917
  %v1021 = vunpack.c.h.b16 %v917
  %v1022 = vunpack.c.l.b16 %v918
  %v1023 = vunpack.c.h.b16 %v918
  %v1024 = vunpack.c.l.b16 %v919
  %v1025 = vunpack.c.h.b16 %v919
  %v1026 = vunpack.c.l.b16 %v920
  %v1027 = vunpack.c.h.b16 %v920
  %v1028 = vunpack.c.l.b16 %v921
  %v1029 = vunpack.c.h.b16 %v921
  %v1030 = vpack.c.b16 %v1008, %v1006
  %v1031 = vpack.c.b16 %v1009, %v1007
  %v1032 = vpack.c.b16 %v1012, %v1010
  %v1033 = vpack.c.b16 %v1013, %v1011
  %v1034 = vpack.c.b16 %v1016, %v1014
  %v1035 = vpack.c.b16 %v1017, %v1015
  %v1036 = vpack.c.b16 %v1020, %v1018
  %v1037 = vpack.c.b16 %v1021, %v1019
  %v1038 = vpack.c.b16 %v1024, %v1022
  %v1039 = vpack.c.b16 %v1025, %v1023
  %v1040 = vpack.c.b16 %v1028, %v1026
  %v1041 = vpack.c.b16 %v1029, %v1027
  %vm1048 = vcmask 457728
  %v1050 = vsel %vm1048, %v1031, 0
  %v1053 = vsel %vm1048, %v1033, 0
  %v1056 = vsel %vm1048, %v1035, 0
  %v1059 = vsel %vm1048, %v1037, 0
  %v1062 = vsel %vm1048, %v1039, 0
  %v1065 = vsel %vm1048, %v1041, 0
  %vm1067 = vcmask 1043456
  %v1069 = vsel %vm1067, %v909, 0
  %1071 = vmatpush.bf16.msra.mxu0 %v905
  %1072 = vmatpush.bf16.msra.mxu0 %v904
  %1073 = vmatpush.bf16.msra.mxu0 %v903
  %1074 = vmatpush.bf16.msra.mxu0 %v902
  %1075 = vmatpush.bf16.msra.mxu0 %v901
  %1076 = vmatpush.bf16.msra.mxu0 %v900
  %1077 = vmatpush.bf16.msra.mxu0 %v899
  %1078 = vmatpush.bf16.msra.mxu0 %v898
  %1079 = vmatmul.bf16.gmra.mxu0 %v1030
  %v1080 = vpop.f32.mrf.mxu0
  %v1081 = vadd.f32 %v937, %v1080
  %v1082 = vpop.f32.mrf.mxu0
  %v1083 = vadd.f32 %v942, %v1082
  %1084 = vmatmul.bf16.gmra.mxu0 %v1032
  %v1085 = vpop.f32.mrf.mxu0
  %v1086 = vadd.f32 %v947, %v1085
  %v1087 = vpop.f32.mrf.mxu0
  %v1088 = vadd.f32 %v952, %v1087
  %1089 = vmatmul.bf16.gmra.mxu0 %v1034
  %v1090 = vpop.f32.mrf.mxu0
  %v1091 = vadd.f32 %v957, %v1090
  %v1092 = vpop.f32.mrf.mxu0
  %v1093 = vadd.f32 %v962, %v1092
  %1094 = vmatmul.bf16.gmra.mxu0 %v1036
  %v1095 = vpop.f32.mrf.mxu0
  %v1096 = vadd.f32 %v967, %v1095
  %v1097 = vpop.f32.mrf.mxu0
  %v1098 = vadd.f32 %v972, %v1097
  %1099 = vmatmul.bf16.gmra.mxu0 %v1038
  %v1100 = vpop.f32.mrf.mxu0
  %v1101 = vadd.f32 %v977, %v1100
  %v1102 = vpop.f32.mrf.mxu0
  %v1103 = vadd.f32 %v982, %v1102
  %1104 = vmatmul.bf16.gmra.mxu0 %v1040
  %v1105 = vpop.f32.mrf.mxu0
  %v1106 = vadd.f32 %v987, %v1105
  %v1107 = vpop.f32.mrf.mxu0
  %v1108 = vadd.f32 %v992, %v1107
  %1109 = vdwg.mxu0
  %1110 = vmatpush.bf16.msra.mxu0 0
  %1111 = vmatpush.bf16.msra.mxu0 0
  %1112 = vmatpush.bf16.msra.mxu0 0
  %1113 = vmatpush.bf16.msra.mxu0 0
  %1114 = vmatpush.bf16.msra.mxu0 %v1069
  %1115 = vmatpush.bf16.msra.mxu0 %v908
  %1116 = vmatpush.bf16.msra.mxu0 %v907
  %1117 = vmatpush.bf16.msra.mxu0 %v906
  %1118 = vmatmul.bf16.gmra.mxu0 %v1050
  %v1119 = vpop.f32.mrf.mxu0
  %v1120 = vadd.f32 %v1081, %v1119
  %v1121 = vpop.f32.mrf.mxu0
  %v1122 = vadd.f32 %v1083, %v1121
  %1123 = vmatmul.bf16.gmra.mxu0 %v1053
  %v1124 = vpop.f32.mrf.mxu0
  %v1125 = vadd.f32 %v1086, %v1124
  %v1126 = vpop.f32.mrf.mxu0
  %v1127 = vadd.f32 %v1088, %v1126
  %1128 = vmatmul.bf16.gmra.mxu0 %v1056
  %v1129 = vpop.f32.mrf.mxu0
  %v1130 = vadd.f32 %v1091, %v1129
  %v1131 = vpop.f32.mrf.mxu0
  %v1132 = vadd.f32 %v1093, %v1131
  %1133 = vmatmul.bf16.gmra.mxu0 %v1059
  %v1134 = vpop.f32.mrf.mxu0
  %v1135 = vadd.f32 %v1096, %v1134
  %v1136 = vpop.f32.mrf.mxu0
  %v1137 = vadd.f32 %v1098, %v1136
  %1138 = vmatmul.bf16.gmra.mxu0 %v1062
  %v1139 = vpop.f32.mrf.mxu0
  %v1140 = vadd.f32 %v1101, %v1139
  %v1141 = vpop.f32.mrf.mxu0
  %v1142 = vadd.f32 %v1103, %v1141
  %1143 = vmatmul.bf16.gmra.mxu0 %v1065
  %v1144 = vpop.f32.mrf.mxu0
  %v1145 = vadd.f32 %v1106, %v1144
  %v1146 = vpop.f32.mrf.mxu0
  %v1147 = vadd.f32 %v1108, %v1146
  %1148 = vdwg.mxu0
  %v1149 = vmax.f32 %v1120, 0.0
  %v1150 = vmax.f32 %v1122, 0.0
  %v1151 = vmax.f32 %v1125, 0.0
  %v1152 = vmax.f32 %v1127, 0.0
  %v1153 = vmax.f32 %v1130, 0.0
  %v1154 = vmax.f32 %v1132, 0.0
  %v1155 = vmax.f32 %v1135, 0.0
  %v1156 = vmax.f32 %v1137, 0.0
  %v1157 = vmax.f32 %v1140, 0.0
  %v1158 = vmax.f32 %v1142, 0.0
  %v1159 = vmax.f32 %v1145, 0.0
  %v1160 = vmax.f32 %v1147, 0.0
  %v1161 = vpack.c.bf16 %v1150, %v1149
  %v1162 = vpack.c.bf16 %v1152, %v1151
  %v1163 = vpack.c.bf16 %v1154, %v1153
  %v1164 = vpack.c.bf16 %v1156, %v1155
  %v1165 = vpack.c.bf16 %v1158, %v1157
  %v1166 = vpack.c.bf16 %v1160, %v1159
  %v1167 = vld [vmem:[%s9] sm:$0xf]
  %v1168 = vld [vmem:[%s9 + $0x4] sm:$0xf]
  %v1169 = vld [vmem:[%s9 + $0x8] sm:$0xf]
  %v1170 = vld [vmem:[%s9 + $0xc] sm:$0xf]
  %v1171 = vld [vmem:[%s9 + $0x10] sm:$0xf]
  %v1172 = vld [vmem:[%s9 + $0x14] sm:$0xf]
  %v1173 = vld [vmem:[%s10] sm:$0xff]
  %v1174 = vld [vmem:[%s10 + $0x8] sm:$0xff]
  %v1175 = vld [vmem:[%s10 + $0x10] sm:$0xff]
  %v1176 = vld [vmem:[%s10 + $0x18] sm:$0xff]
  %v1177 = vld [vmem:[%s10 + $0x20] sm:$0xff]
  %v1178 = vld [vmem:[%s10 + $0x28] sm:$0xff]
  %1180 = vset.pattern.permute.xlu0 0
  %1181 = vperm.xlu0 %1180, %v1173
  %v1182 = vpop.permute.xlu0 %1181
  %1185 = vset.pattern.permute.xlu0 0
  %1186 = vperm.xlu0 %1185, %v1174
  %v1187 = vpop.permute.xlu0 %1186
  %1190 = vset.pattern.permute.xlu0 0
  %1191 = vperm.xlu0 %1190, %v1175
  %v1192 = vpop.permute.xlu0 %1191
  %1195 = vset.pattern.permute.xlu0 0
  %1196 = vperm.xlu0 %1195, %v1176
  %v1197 = vpop.permute.xlu0 %1196
  %1200 = vset.pattern.permute.xlu0 0
  %1201 = vperm.xlu0 %1200, %v1177
  %v1202 = vpop.permute.xlu0 %1201
  %1205 = vset.pattern.permute.xlu0 0
  %1206 = vperm.xlu0 %1205, %v1178
  %v1207 = vpop.permute.xlu0 %1206
  %v1215 = vunpack.c.l.b16 %v1167
  %v1216 = vunpack.c.l.b16 %v1168
  %v1217 = vunpack.c.l.b16 %v1169
  %v1218 = vunpack.c.l.b16 %v1170
  %v1219 = vunpack.c.l.b16 %v1171
  %v1220 = vunpack.c.l.b16 %v1172
  %v1221 = vpack.c.b16 %v1216, %v1215
  %v1222 = vpack.c.b16 %v1218, %v1217
  %v1223 = vpack.c.b16 %v1220, %v1219
  %vm1224 = vcmask 785408
  %v1226 = vsel %vm1224, %v1221, 0
  %v1229 = vsel %vm1224, %v1222, 0
  %v1232 = vsel %vm1224, %v1223, 0
  %1234 = vmatpush.bf16.msra.mxu0 0
  %1235 = vmatpush.bf16.msra.mxu0 0
  %1236 = vmatpush.bf16.msra.mxu0 %v1166
  %1237 = vmatpush.bf16.msra.mxu0 %v1165
  %1238 = vmatpush.bf16.msra.mxu0 %v1164
  %1239 = vmatpush.bf16.msra.mxu0 %v1163
  %1240 = vmatpush.bf16.msra.mxu0 %v1162
  %1241 = vmatpush.bf16.msra.mxu0 %v1161
  %1242 = vmatmul.bf16.gmra.mxu0 %v1226
  %v1243 = vpop.f32.mrf.mxu0
  %v1244 = vadd.f32 %v1182, %v1243
  %v1245 = vpop.f32.mrf.mxu0
  %v1246 = vadd.f32 %v1187, %v1245
  %1247 = vmatmul.bf16.gmra.mxu0 %v1229
  %v1248 = vpop.f32.mrf.mxu0
  %v1249 = vadd.f32 %v1192, %v1248
  %v1250 = vpop.f32.mrf.mxu0
  %v1251 = vadd.f32 %v1197, %v1250
  %1252 = vmatmul.bf16.gmra.mxu0 %v1232
  %v1253 = vpop.f32.mrf.mxu0
  %v1254 = vadd.f32 %v1202, %v1253
  %v1255 = vpop.f32.mrf.mxu0
  %v1256 = vadd.f32 %v1207, %v1255
  %1257 = vdwg.mxu0
  %v1258 = vmax.f32 %v1244, 0.0
  %v1259 = vmax.f32 %v1246, 0.0
  %v1260 = vmax.f32 %v1249, 0.0
  %v1261 = vmax.f32 %v1251, 0.0
  %v1262 = vmax.f32 %v1254, 0.0
  %v1263 = vmax.f32 %v1256, 0.0
  %v1264 = vpack.c.bf16 %v1259, %v1258
  %v1265 = vpack.c.bf16 %v1261, %v1260
  %v1266 = vpack.c.bf16 %v1263, %v1262
  %v1267 = vld [vmem:[%s11] sm:$0x1]
  %v1268 = vld [vmem:[#allocation2] sm:$0x1]
  %1270 = vset.pattern.permute.xlu0 0
  %1271 = vperm.xlu0 %1270, %v1268
  %v1272 = vpop.permute.xlu0 %1271
  %v1274 = vperm.slane %v1272, 0
  %vm1275 = vcmask 392192
  %v1277 = vsel %vm1275, %v1267, 0
  %1279 = vmatpush.bf16.msra.mxu0 0
  %1280 = vmatpush.bf16.msra.mxu0 0
  %1281 = vmatpush.bf16.msra.mxu0 0
  %1282 = vmatpush.bf16.msra.mxu0 0
  %1283 = vmatpush.bf16.msra.mxu0 0
  %1284 = vmatpush.bf16.msra.mxu0 %v1266
  %1285 = vmatpush.bf16.msra.mxu0 %v1265
  %1286 = vmatpush.bf16.msra.mxu0 %v1264
  %1287 = vmatmul.bf16.gmra.mxu0 %v1277
  %v1288 = vpop.f32.mrf.mxu0
  %v1289 = vadd.f32 %v1274, %v1288
  %v1290 = vpop.f32.mrf.mxu0
  %1291 = vdwg.mxu0
  %v1292 = vtanh.pop %v1289
  %1293 = vst [vmem:[%s13] sm:$0x1] %v1292
  // Predicated region
  $region54: #{nngrid_forward.1} parent=0 // pred_check
    _
  $region55: #{nngrid_forward.1} parent=0 // pred_check_branch
    %1295 = sbr.rel (0) target = $region57
  $region56: #{nngrid_forward.1} parent=0 // pred_region
    _
  $region57: #{nngrid_forward.1} parent=0 // pred_fallthru
    _
  // Predicated region
  $region58: #{nngrid_forward.1} parent=0 // pred_check
    _
  $region59: #{nngrid_forward.1} parent=0 // pred_check_branch
    %1297 = sbr.rel (0) target = $region61
  $region60: #{nngrid_forward.1} parent=0 // pred_region
    _
  $region61: #{nngrid_forward.1} parent=0 // pred_fallthru
    _

</llo_original>
